<compile_context>
chip_gen: v6e
topology: v6e:2x2x1
jax: 0.10.0
libtpu: 0.0.40
codegen_flags: <defaults>
</compile_context>

<pallas_src>
import jax
import jax.numpy as jnp
from jax.experimental import pallas as pl
from jax.experimental.pallas import tpu as pltpu

N = 100          # true parameter length
LANES = 128      # lane-padded length (one vreg row)


def _model_kernel(param_ref, rand_ref, preds_ref, loss_ref):
    # param_ref: VMEM (1, 128) f32, lanes >= N are zero
    # rand_ref:  VMEM (1, 128) f32, lanes >= N are zero
    # preds_ref: VMEM (1, 128) f32
    # loss_ref:  SMEM (1, 1) f32
    #
    # preds = param + rand * 0.01   (elementwise, VPU). Padded lanes are
    # 0 + 0*0.01 = 0, so no mask is needed for the reduction and the padded
    # lanes of preds stay clean zeros (single unmasked vreg store).
    x = param_ref[...] + rand_ref[...] * jnp.float32(0.01)
    preds_ref[...] = x
    loss_ref[0, 0] = jnp.abs(jnp.sum(x))


def _pad_to_lanes(v):
    # (N,) f32 -> lane-dense (1, LANES) f32 with zero padding past N.
    return jnp.pad(v.astype(jnp.float32), (0, LANES - N)).reshape(1, LANES)


@jax.jit
def my_custom_model_forward(x, param, key):
    """Pallas equivalent of MyCustomModel.forward.

    `x` is accepted for API parity with the PyTorch module but (like the
    original) is ignored by the computation.
    Returns ({'preds': (100,) f32}, scalar f32 loss).
    """
    del x  # module ignores its input

    # Uniform [0, 1) noise, stand-in for torch.rand_like (not bit-identical).
    rand = jax.random.uniform(key, (N,), dtype=jnp.float32)

    param_padded = _pad_to_lanes(param)
    rand_padded = _pad_to_lanes(rand)

    preds_padded, loss = pl.pallas_call(
        _model_kernel,
        out_shape=(
            jax.ShapeDtypeStruct((1, LANES), jnp.float32),
            jax.ShapeDtypeStruct((1, 1), jnp.float32),
        ),
        in_specs=[
            pl.BlockSpec(memory_space=pltpu.MemorySpace.VMEM),   # param
            pl.BlockSpec(memory_space=pltpu.MemorySpace.VMEM),   # rand
        ],
        out_specs=(
            pl.BlockSpec(memory_space=pltpu.MemorySpace.VMEM),   # preds
            pl.BlockSpec(memory_space=pltpu.MemorySpace.SMEM),   # loss scalar
        ),
    )(param_padded, rand_padded)

    return {"preds": preds_padded[0, :N]}, loss[0, 0]


if __name__ == "__main__":
    key = jax.random.PRNGKey(0)
    key_x, key_rng = jax.random.split(key)

    # Deterministic parameter init, matching nn.Parameter(torch.ones(100)).
    param = jnp.ones((N,), jnp.float32)
    # Dummy input (forward ignores it, same as the PyTorch module).
    x = jax.random.normal(key_x, (2, 4), dtype=jnp.float32)

    out_dict, loss = my_custom_model_forward(x, param, key_rng)
    jax.block_until_ready((out_dict, loss))

    preds = out_dict["preds"]
    assert preds.shape == (N,)
    # preds must lie in [1.0, 1.01) elementwise; loss ~= 100 + small noise.
    assert bool(jnp.all(preds >= 1.0)) and bool(jnp.all(preds < 1.01))
    assert float(N) <= float(loss) < float(N) + N * 0.01

    print("KERNEL_OK")
</pallas_src>

<mosaic_0001>
module attributes {stable_mosaic.version = 11 : i64} {
  func.func @_model_kernel(%arg0: memref<1x128xf32, #tpu.memory_space<vmem>>, %arg1: memref<1x128xf32, #tpu.memory_space<vmem>>, %arg2: memref<1x128xf32, #tpu.memory_space<vmem>>, %arg3: memref<1x1xf32, #tpu.memory_space<smem>>) attributes {dimension_semantics = [], scalar_prefetch = 0 : i64, scratch_operands = 0 : i64, tpu.core_type = #tpu.core_type<tc>} {
    %c0 = arith.constant 0 : index
    %c0_0 = arith.constant 0 : index
    %0 = vector.load %arg0[%c0, %c0_0] : memref<1x128xf32, #tpu.memory_space<vmem>>, vector<1x128xf32>
    %c0_1 = arith.constant 0 : index
    %c0_2 = arith.constant 0 : index
    %1 = vector.load %arg1[%c0_1, %c0_2] : memref<1x128xf32, #tpu.memory_space<vmem>>, vector<1x128xf32>
    %cst = arith.constant 0.00999999977 : f32
    %2 = vector.broadcast %cst : f32 to vector<1x128xf32>
    %3 = arith.mulf %1, %2 : vector<1x128xf32>
    %4 = arith.addf %0, %3 : vector<1x128xf32>
    %c0_3 = arith.constant 0 : index
    %c0_4 = arith.constant 0 : index
    %5 = vector.load %arg2[%c0_3, %c0_4] : memref<1x128xf32, #tpu.memory_space<vmem>>, vector<1x128xf32>
    tpu.vector_store %arg2[%c0_3, %c0_4], %4 {strides = array<i32>} : memref<1x128xf32, #tpu.memory_space<vmem>>, vector<1x128xf32>,
    %6 = vector.shape_cast %4 : vector<1x128xf32> to vector<1x1x128xf32>
    %cst_5 = arith.constant dense<0.000000e+00> : vector<1xf32>
    %7 = vector.multi_reduction <add>, %6, %cst_5 [1, 2] : vector<1x1x128xf32> to vector<1xf32>
    %8 = vector.shape_cast %7 : vector<1xf32> to vector<1x1x1xf32>
    %9 = vector.extract %8[0, 0, 0] : f32 from vector<1x1x1xf32>
    %10 = math.absf %9 : f32
    %c0_6 = arith.constant 0 : index
    %c0_7 = arith.constant 0 : index
    %11 = memref.load %arg3[%c0_6, %c0_7] : memref<1x1xf32, #tpu.memory_space<smem>>
    memref.store %10, %arg3[%c0_6, %c0_7] : memref<1x1xf32, #tpu.memory_space<smem>>
    return
  }
}

</mosaic_0001>

<llo_original>
// kernel: my_custom_model_forward.1
$region0: #{my_custom_model_forward.1}
  #allocation0 [shape = 'u32[]', space=smem, size = 0x4, offset = 0x4, fixed_abs, tag = 'smem constant byte address 0x4 - core index']
  #allocation1 [shape = 'u32[144,128]{1,0:T(1,128)}', space=vmem, size = 0x12000, scoped, tag = 'internal scratch']
  %s0 = inlined_call_operand.vmem [shape: f32[1,128], index: 0, kind: input, shape index: {}]
  %s1 = inlined_call_operand.vmem [shape: f32[1,128], index: 1, kind: input, shape index: {}]
  %s2 = inlined_call_operand.vmem [shape: f32[1,128], index: 2, kind: output, shape index: {0}]
  %s3 = inlined_call_operand.hbm [shape: f32[1,1], index: 3, kind: output, shape index: {1}]
  %4 = xla_tuple %s2, %s3
  %s5 = sld [smem:[#allocation0]]
  $region26: #{my_custom_model_forward.1} parent=0
    _
  %s7 = ssub.s32 1, %s5
  %s8 = scalar_select 0, %s7, %s5
  $region1: #{my_custom_model_forward.1} parent=0
    #allocation2 [shape = 'u8[512]{0}', space=smem, size = 0x200, scoped, tag = 'output window, operand 1, single buffered']
    #allocation3 [shape = 's32[1]{0}', space=sflag, size = 0x4, scoped, tag = 'scoped memory for my_custom_model_forward.1']
    %9 = vsyncpa [#allocation3], 0
    // Predicated region
    $region2: #{my_custom_model_forward.1} parent=1 // pred_check
      _
    $region3: #{my_custom_model_forward.1} parent=1 // pred_check_branch
      %11 = sbr.rel (0) target = $region5
    $region4: #{my_custom_model_forward.1} parent=1 // pred_region
      _
    $region5: #{my_custom_model_forward.1} parent=1 // pred_fallthru
      _
    // Predicated region
    $region6: #{my_custom_model_forward.1} parent=1 // pred_check
      _
    $region7: #{my_custom_model_forward.1} parent=1 // pred_check_branch
      %13 = sbr.rel (0) target = $region9
    $region8: #{my_custom_model_forward.1} parent=1 // pred_region
      _
    $region9: #{my_custom_model_forward.1} parent=1 // pred_fallthru
      _
    %v14 = vld [vmem:[%s0] sm:$0x1]
    %v15 = vld [vmem:[%s1] sm:$0x1]
    %v16 = vmul.f32 %v15, 0.01
    %v17 = vadd.f32 %v14, %v16
    %18 = vst [vmem:[%s2] sm:$0x1] %v17
    %vm19 = vcmask 1040384
    %v20 = vsel %vm19, %v17, 0.0
    %21 = vadd.xlane.f32.xlu0 %v20
    %v22 = vpop.xlane.xlu0 %21
    %v23 = vrot.slane %v22, 4
    %v24 = vadd.f32 %v22, %v23
    %v25 = vrot.slane %v24, 2
    %v26 = vadd.f32 %v24, %v25
    %v27 = vrot.slane %v26, 1
    %v28 = vadd.f32 %v26, %v27
    %s29 = vtos %v28
    %s30 = sand.u32 2147483647, %s29
    %s31 = scalar_lea.smem [#allocation2], 0
    %32 = sst [smem:[%s31]] %s30
    // Predicated region
    $region10: #{my_custom_model_forward.1} parent=1 // pred_check
      _
    $region11: #{my_custom_model_forward.1} parent=1 // pred_check_branch
      %34 = sbr.rel (0) target = $region13
    $region12: #{my_custom_model_forward.1} parent=1 // pred_region
      _
    $region13: #{my_custom_model_forward.1} parent=1 // pred_fallthru
      _
    // Predicated region
    $region14: #{my_custom_model_forward.1} parent=1 // pred_check
      _
    $region15: #{my_custom_model_forward.1} parent=1 // pred_check_branch
      %36 = sbr.rel (0) target = $region17
    $region16: #{my_custom_model_forward.1} parent=1 // pred_region
      %s38 = ssub.s32 16, 16
      %39 = vsyncadd [#allocation3], %s38
      %42 = dma.smem_to_hbm [#allocation2], 16, %s3, [#allocation3]
    $region17: #{my_custom_model_forward.1} parent=1 // pred_fallthru
      _
    // Predicated region
    $region18: #{my_custom_model_forward.1} parent=1 // pred_check
      _
    $region19: #{my_custom_model_forward.1} parent=1 // pred_check_branch
      %44 = sbr.rel (0) target = $region21
    $region20: #{my_custom_model_forward.1} parent=1 // pred_region
      _
    $region21: #{my_custom_model_forward.1} parent=1 // pred_fallthru
      _
    // Predicated region
    $region22: #{my_custom_model_forward.1} parent=1 // pred_check
      _
    $region23: #{my_custom_model_forward.1} parent=1 // pred_check_branch
      %46 = sbr.rel (0) target = $region25
    $region24: #{my_custom_model_forward.1} parent=1 // pred_region
      %47 = dma.done [#allocation3], 16
    $region25: #{my_custom_model_forward.1} parent=1 // pred_fallthru
      _
    %48 = sfence
    %49 = vsyncpa [#allocation3], 1

</llo_original>
